<compile_context>
chip_gen: v7x
topology: tpu7x:2x2x1
jax: 0.10.0
libtpu: 0.0.40
codegen_flags: <defaults>
</compile_context>

<pallas_src>
import functools
import math

import jax
import jax.numpy as jnp
from jax.experimental import pallas as pl
from jax.experimental.pallas import tpu as pltpu


# --------------------------------------------------------------------------------------
# Kernel
# --------------------------------------------------------------------------------------
def _optimizer_kernel(x_ref, s_ref, w0x_ref, whh0_ref, w1_ref, b01_ref,
                      wout_ref, bout_ref, out_ref, sout_ref,
                      *, hp, preproc, preproc_factor):
    Hp = hp

    def lstm_gates_to_state(gates, c):
        # PyTorch LSTMCell gate order: i, f, g, o (rows grouped in Hp-sized blocks,
        # all block boundaries are multiples of 8 sublanes).
        i = jax.nn.sigmoid(gates[0 * Hp:1 * Hp])
        f = jax.nn.sigmoid(gates[1 * Hp:2 * Hp])
        g = jnp.tanh(gates[2 * Hp:3 * Hp])
        o = jax.nn.sigmoid(gates[3 * Hp:4 * Hp])
        c_new = f * c + i * g
        h_new = o * jnp.tanh(c_new)
        return h_new, c_new

    x = x_ref[...]                          # (1, BN)  raw gradient row (batch on lanes)
    s = s_ref[...]                          # (4*Hp, BN) packed [h0; c0; h1; c1]
    h0 = s[0 * Hp:1 * Hp]
    c0 = s[1 * Hp:2 * Hp]
    h1 = s[2 * Hp:3 * Hp]
    c1 = s[3 * Hp:4 * Hp]

    b0 = b01_ref[:, 0:1]                    # (4*Hp, 1) combined b_ih0 + b_hh0
    b1 = b01_ref[:, 1:2]                    # (4*Hp, 1) combined b_ih1 + b_hh1

    # ---- layer-0 input contribution: K in {1, 2} -> VPU broadcast MAC, not an MXU pass.
    if preproc:
        pf = preproc_factor
        thr = math.exp(-pf)
        big = math.exp(pf)
        absx = jnp.abs(x)
        keep = absx >= thr
        col0 = jnp.where(keep, jnp.log(absx + 1e-8) * (1.0 / pf), -1.0)
        sgn = jnp.where(x > 0.0, 1.0, jnp.where(x < 0.0, -1.0, 0.0))
        col1 = jnp.where(keep, sgn, big * x)
        xc = w0x_ref[:, 0:1] * col0 + w0x_ref[:, 1:2] * col1    # (4*Hp, BN)
    else:
        xc = w0x_ref[:, 0:1] * x                                # (4*Hp, BN)

    # ---- LSTM cell 0: one fused matmul for all 4 gates.
    gates0 = jnp.dot(whh0_ref[...], h0,
                     preferred_element_type=jnp.float32) + xc + b0
    h0n, c0n = lstm_gates_to_state(gates0, c0)

    # ---- LSTM cell 1: concat [h0_new; h1] (8-aligned boundary) -> one fused matmul.
    hh = jnp.concatenate([h0n, h1], axis=0)                     # (2*Hp, BN)
    gates1 = jnp.dot(w1_ref[...], hh,
                     preferred_element_type=jnp.float32) + b1
    h1n, c1n = lstm_gates_to_state(gates1, c1)

    # ---- output head (H -> 1): VPU multiply + sublane reduce, skip a 1-row MXU pass.
    out_ref[...] = jnp.sum(h1n * wout_ref[...], axis=0, keepdims=True) + bout_ref[...]

    # ---- packed, lane-dense state writeback.
    sout_ref[...] = jnp.concatenate([h0n, c0n, h1n, c1n], axis=0)


# --------------------------------------------------------------------------------------
# Parameter init / packing (packing runs ONCE, not per forward call)
# --------------------------------------------------------------------------------------
def init_params(key, preproc=False, hidden_sz=20):
    """Deterministic parameter init with PyTorch shapes (uniform(-1/sqrt(H), 1/sqrt(H)))."""
    in_sz = 2 if preproc else 1
    H = hidden_sz
    bound = 1.0 / math.sqrt(H)
    keys = jax.random.split(key, 10)

    def u(kk, shape):
        return jax.random.uniform(kk, shape, jnp.float32, -bound, bound)

    return dict(
        w_ih0=u(keys[0], (4 * H, in_sz)),
        w_hh0=u(keys[1], (4 * H, H)),
        b_ih0=u(keys[2], (4 * H,)),
        b_hh0=u(keys[3], (4 * H,)),
        w_ih1=u(keys[4], (4 * H, H)),
        w_hh1=u(keys[5], (4 * H, H)),
        b_ih1=u(keys[6], (4 * H,)),
        b_hh1=u(keys[7], (4 * H,)),
        w_out=u(keys[8], (1, H)),
        b_out=u(keys[9], (1,)),
    )


def _round_up(x, m):
    return ((x + m - 1) // m) * m


def _pack_params(params, *, H, Hp):
    """Pack PyTorch-shaped params into padded, transposed-layout slabs (done once)."""

    def gate_pad(w, out_cols=None):
        # (4H, K) -> (4*Hp, out_cols): zero-pad each gate's rows H->Hp (and cols K->out_cols).
        K = w.shape[1]
        oc = K if out_cols is None else out_cols
        w4 = w.astype(jnp.float32).reshape(4, H, K)
        w4 = jnp.pad(w4, ((0, 0), (0, Hp - H), (0, oc - K)))
        return w4.reshape(4 * Hp, oc)

    def bias_pad(b_ih, b_hh):
        b = (b_ih + b_hh).astype(jnp.float32).reshape(4, H)
        b = jnp.pad(b, ((0, 0), (0, Hp - H)))
        return b.reshape(4 * Hp, 1)

    w0x = gate_pad(params['w_ih0'])                                   # (4*Hp, 1|2)
    whh0 = gate_pad(params['w_hh0'], Hp)                              # (4*Hp, Hp)
    w1 = jnp.concatenate([gate_pad(params['w_ih1'], Hp),
                          gate_pad(params['w_hh1'], Hp)], axis=1)     # (4*Hp, 2*Hp)
    b01 = jnp.concatenate([bias_pad(params['b_ih0'], params['b_hh0']),
                           bias_pad(params['b_ih1'], params['b_hh1'])], axis=1)  # (4*Hp, 2)
    wout = jnp.pad(params['w_out'].astype(jnp.float32).reshape(H, 1),
                   ((0, Hp - H), (0, 0)))                             # (Hp, 1)
    bout = params['b_out'].astype(jnp.float32).reshape(1, 1)          # (1, 1)
    return (w0x, whh0, w1, b01, wout, bout)


# --------------------------------------------------------------------------------------
# Per-chip tiling config + wrapper
# --------------------------------------------------------------------------------------
def _chip_config():
    """(batch_tile, vmem_limit_bytes, input_buffer_depth) per TPU generation."""
    kind = ""
    try:
        kind = jax.devices()[0].device_kind.lower()
    except Exception:
        pass
    if "v5" in kind:
        # v5e: 128-aligned tiles, deeper buffering to hide the slower HBM, f32 only.
        return 512, 64 * 1024 * 1024, 3
    if "v7" in kind:
        # v7x: only 64 MiB VMEM -> smaller tile, leave headroom; 2 TCs get the parallel axis.
        return 512, 48 * 1024 * 1024, 2
    # v6e (and default): big 256-multiple tile, raise scoped VMEM above the 32 MiB default.
    return 1024, 64 * 1024 * 1024, 2


def _batch_block_spec(rows, bn, nbuf):
    idx = lambda i: (0, i)
    if nbuf and nbuf > 2 and hasattr(pl, "Buffered"):
        try:
            return pl.BlockSpec((rows, bn), idx, pipeline_mode=pl.Buffered(nbuf))
        except Exception:
            pass
    return pl.BlockSpec((rows, bn), idx)


def make_optimizer_forward(params, *, preproc=False, preproc_factor=10.0,
                           hidden_sz=20, block_n=None, interpret=False):
    """Build a jitted forward() with weights pre-packed once (cached across calls)."""
    H = hidden_sz
    Hp = _round_up(max(H, 8), 8)
    in_sz = 2 if preproc else 1
    packed = _pack_params(params, H=H, Hp=Hp)

    cfg_bn, vmem_limit, nbuf = _chip_config()
    if block_n is not None:
        cfg_bn = block_n

    kern = functools.partial(_optimizer_kernel, hp=Hp, preproc=preproc,
                             preproc_factor=float(preproc_factor))

    @jax.jit
    def forward(inp, hidden, cell):
        N = inp.shape[0]
        bn = min(cfg_bn, _round_up(N, 128))
        np_ = _round_up(N, bn)

        # Interface glue: transpose to (features, batch), zero-pad H->Hp and N->np_.
        # TODO(synk): a training loop that keeps (hidden, cell) in this packed transposed
        # layout between steps can drop these transposes entirely.
        x_t = jnp.pad(inp.astype(jnp.float32).reshape(1, N), ((0, 0), (0, np_ - N)))

        def to_t(a):
            return jnp.pad(a.astype(jnp.float32).T, ((0, Hp - H), (0, np_ - N)))

        s_in = jnp.concatenate([to_t(hidden[0]), to_t(cell[0]),
                                to_t(hidden[1]), to_t(cell[1])], axis=0)   # (4*Hp, np_)

        grid = (np_ // bn,)
        out, s_out = pl.pallas_call(
            kern,
            out_shape=(jax.ShapeDtypeStruct((1, np_), jnp.float32),
                       jax.ShapeDtypeStruct((4 * Hp, np_), jnp.float32)),
            grid=grid,
            in_specs=[
                _batch_block_spec(1, bn, nbuf),                      # x (streamed)
                _batch_block_spec(4 * Hp, bn, nbuf),                 # packed state (streamed)
                pl.BlockSpec((4 * Hp, in_sz), lambda i: (0, 0)),     # W_ih0 (resident)
                pl.BlockSpec((4 * Hp, Hp), lambda i: (0, 0)),        # W_hh0 (resident)
                pl.BlockSpec((4 * Hp, 2 * Hp), lambda i: (0, 0)),    # [W_ih1 | W_hh1]
                pl.BlockSpec((4 * Hp, 2), lambda i: (0, 0)),         # [b0 | b1]
                pl.BlockSpec((Hp, 1), lambda i: (0, 0)),             # w_out
                pl.BlockSpec((1, 1), lambda i: (0, 0)),              # b_out
            ],
            out_specs=(
                pl.BlockSpec((1, bn), lambda i: (0, i)),             # output (lane-dense)
                pl.BlockSpec((4 * Hp, bn), lambda i: (0, i)),        # packed new state
            ),
            compiler_params=pltpu.CompilerParams(
                dimension_semantics=("parallel",),
                vmem_limit_bytes=vmem_limit),
            interpret=interpret,
        )(x_t, s_in, *packed)

        output = out[:, :N].T                                        # (N, 1)
        h0n = s_out[0 * Hp:0 * Hp + H, :N].T
        c0n = s_out[1 * Hp:1 * Hp + H, :N].T
        h1n = s_out[2 * Hp:2 * Hp + H, :N].T
        c1n = s_out[3 * Hp:3 * Hp + H, :N].T
        return output, (h0n, h1n), (c0n, c1n)

    return forward


# --------------------------------------------------------------------------------------
# Pure-JAX reference (for correctness check)
# --------------------------------------------------------------------------------------
def _lstm_cell_ref(x, h, c, w_ih, w_hh, b_ih, b_hh):
    gates = x @ w_ih.T + b_ih + h @ w_hh.T + b_hh
    H = h.shape[-1]
    i = jax.nn.sigmoid(gates[:, 0:H])
    f = jax.nn.sigmoid(gates[:, H:2 * H])
    g = jnp.tanh(gates[:, 2 * H:3 * H])
    o = jax.nn.sigmoid(gates[:, 3 * H:4 * H])
    c_new = f * c + i * g
    return o * jnp.tanh(c_new), c_new


def _forward_ref(params, inp, hidden, cell, *, preproc, preproc_factor, hidden_sz):
    N = inp.shape[0]
    if preproc:
        x = inp.astype(jnp.float32).reshape(N)
        thr = math.exp(-preproc_factor)
        keep = jnp.abs(x) >= thr
        col0 = jnp.where(keep, jnp.log(jnp.abs(x) + 1e-8) / preproc_factor, -1.0)
        col1 = jnp.where(keep, jnp.sign(x), math.exp(preproc_factor) * x)
        inp = jnp.stack([col0, col1], axis=1)
    h0, c0 = _lstm_cell_ref(inp, hidden[0], cell[0], params['w_ih0'],
                            params['w_hh0'], params['b_ih0'], params['b_hh0'])
    h1, c1 = _lstm_cell_ref(h0, hidden[1], cell[1], params['w_ih1'],
                            params['w_hh1'], params['b_ih1'], params['b_hh1'])
    out = h1 @ params['w_out'].T + params['b_out']
    return out, (h0, h1), (c0, c1)


# --------------------------------------------------------------------------------------
if __name__ == "__main__":
    key = jax.random.PRNGKey(0)
    H = 20   # module default hidden_sz

    cases = [
        dict(preproc=False, N=64, block_n=None),   # single-block path
        dict(preproc=True, N=300, block_n=128),    # multi-step grid + batch padding path
    ]

    for idx, cfg in enumerate(cases):
        ck = jax.random.fold_in(key, idx)
        pk, xk, hk = jax.random.split(ck, 3)
        hkeys = jax.random.split(hk, 4)
        N = cfg['N']

        params = init_params(pk, preproc=cfg['preproc'], hidden_sz=H)
        hidden = (jax.random.normal(hkeys[0], (N, H), jnp.float32),
                  jax.random.normal(hkeys[1], (N, H), jnp.float32))
        cell = (jax.random.normal(hkeys[2], (N, H), jnp.float32),
                jax.random.normal(hkeys[3], (N, H), jnp.float32))
        inp = jax.random.normal(xk, (N, 1), jnp.float32) * 0.1

        fwd = make_optimizer_forward(params, preproc=cfg['preproc'],
                                     preproc_factor=10.0, hidden_sz=H,
                                     block_n=cfg['block_n'])
        out, (h0, h1), (c0, c1) = fwd(inp, hidden, cell)
        jax.block_until_ready((out, h0, h1, c0, c1))

        r_out, (r_h0, r_h1), (r_c0, r_c1) = _forward_ref(
            params, inp, hidden, cell,
            preproc=cfg['preproc'], preproc_factor=10.0, hidden_sz=H)
        for a, b in ((out, r_out), (h0, r_h0), (h1, r_h1), (c0, r_c0), (c1, r_c1)):
            assert a.shape == b.shape, f"shape mismatch {a.shape} vs {b.shape}"
            assert jnp.allclose(a, b, atol=1e-5, rtol=1e-5), "mismatch vs reference"

    print("KERNEL_OK")
</pallas_src>

<mosaic_0001>
module attributes {stable_mosaic.version = 11 : i64} {
  func.func @_optimizer_kernel(%arg0: i32, %arg1: memref<1x128xf32, #tpu.memory_space<vmem>>, %arg2: memref<96x128xf32, #tpu.memory_space<vmem>>, %arg3: memref<96x1xf32, #tpu.memory_space<vmem>>, %arg4: memref<96x24xf32, #tpu.memory_space<vmem>>, %arg5: memref<96x48xf32, #tpu.memory_space<vmem>>, %arg6: memref<96x2xf32, #tpu.memory_space<vmem>>, %arg7: memref<24x1xf32, #tpu.memory_space<vmem>>, %arg8: memref<1x1xf32, #tpu.memory_space<vmem>>, %arg9: memref<1x128xf32, #tpu.memory_space<vmem>>, %arg10: memref<96x128xf32, #tpu.memory_space<vmem>>) attributes {dimension_semantics = [#tpu.dimension_semantics<parallel>], iteration_bounds = array<i64: 1>, scalar_prefetch = 0 : i64, scratch_operands = 0 : i64, tpu.core_type = #tpu.core_type<tc>, window_params = [{transform_indices = @transform_0, window_bounds = array<i64: 1, 128>}, {transform_indices = @transform_1, window_bounds = array<i64: 96, 128>}, {pipeline_mode = #tpu.pipeline_mode<synchronous>, transform_indices = @transform_2, window_bounds = array<i64: 96, 1>}, {pipeline_mode = #tpu.pipeline_mode<synchronous>, transform_indices = @transform_3, window_bounds = array<i64: 96, 24>}, {pipeline_mode = #tpu.pipeline_mode<synchronous>, transform_indices = @transform_4, window_bounds = array<i64: 96, 48>}, {pipeline_mode = #tpu.pipeline_mode<synchronous>, transform_indices = @transform_5, window_bounds = array<i64: 96, 2>}, {pipeline_mode = #tpu.pipeline_mode<synchronous>, transform_indices = @transform_6, window_bounds = array<i64: 24, 1>}, {pipeline_mode = #tpu.pipeline_mode<synchronous>, transform_indices = @transform_7, window_bounds = array<i64: 1, 1>}, {transform_indices = @transform_8, window_bounds = array<i64: 1, 128>}, {transform_indices = @transform_9, window_bounds = array<i64: 96, 128>}]} {
    %c0 = arith.constant 0 : index
    %c0_0 = arith.constant 0 : index
    %0 = vector.load %arg1[%c0, %c0_0] : memref<1x128xf32, #tpu.memory_space<vmem>>, vector<1x128xf32>
    %c0_1 = arith.constant 0 : index
    %c0_2 = arith.constant 0 : index
    %1 = vector.load %arg2[%c0_1, %c0_2] : memref<96x128xf32, #tpu.memory_space<vmem>>, vector<96x128xf32>
    %2 = vector.extract_strided_slice %1 {offsets = [0, 0], sizes = [24, 128], strides = [1, 1]} : vector<96x128xf32> to vector<24x128xf32>
    %3 = vector.extract_strided_slice %1 {offsets = [24, 0], sizes = [24, 128], strides = [1, 1]} : vector<96x128xf32> to vector<24x128xf32>
    %4 = vector.extract_strided_slice %1 {offsets = [48, 0], sizes = [24, 128], strides = [1, 1]} : vector<96x128xf32> to vector<24x128xf32>
    %5 = vector.extract_strided_slice %1 {offsets = [72, 0], sizes = [24, 128], strides = [1, 1]} : vector<96x128xf32> to vector<24x128xf32>
    %c0_3 = arith.constant 0 : index
    %c0_4 = arith.constant 0 : index
    %6 = vector.load %arg6[%c0_3, %c0_4] : memref<96x2xf32, #tpu.memory_space<vmem>>, vector<96x1xf32>
    %c0_5 = arith.constant 0 : index
    %c1 = arith.constant 1 : index
    %7 = vector.load %arg6[%c0_5, %c1] : memref<96x2xf32, #tpu.memory_space<vmem>>, vector<96x1xf32>
    %c0_6 = arith.constant 0 : index
    %c0_7 = arith.constant 0 : index
    %8 = vector.load %arg3[%c0_6, %c0_7] : memref<96x1xf32, #tpu.memory_space<vmem>>, vector<96x1xf32>
    %9 = vector.broadcast %8 : vector<96x1xf32> to vector<96x128xf32>
    %10 = vector.broadcast %0 : vector<1x128xf32> to vector<96x128xf32>
    %11 = arith.mulf %9, %10 : vector<96x128xf32>
    %c0_8 = arith.constant 0 : index
    %c0_9 = arith.constant 0 : index
    %12 = vector.load %arg4[%c0_8, %c0_9] : memref<96x24xf32, #tpu.memory_space<vmem>>, vector<96x24xf32>
    %cst = arith.constant dense<0.000000e+00> : vector<96x128xf32>
    %13 = tpu.matmul %12, %2, %cst {dimension_numbers = #tpu.dot_dimension_numbers<[1], [0], [0], [1], [0, 0, 1, 1], [], []>} : vector<96x24xf32>, vector<24x128xf32>, vector<96x128xf32> -> vector<96x128xf32>
    %14 = arith.addf %13, %11 : vector<96x128xf32>
    %15 = vector.broadcast %6 : vector<96x1xf32> to vector<96x128xf32>
    %16 = arith.addf %14, %15 : vector<96x128xf32>
    %17 = vector.extract_strided_slice %16 {offsets = [0, 0], sizes = [24, 128], strides = [1, 1]} : vector<96x128xf32> to vector<24x128xf32>
    %18 = arith.negf %17 : vector<24x128xf32>
    %19 = math.exp %18 : vector<24x128xf32>
    %cst_10 = arith.constant 1.000000e+00 : f32
    %20 = vector.broadcast %cst_10 : f32 to vector<24x128xf32>
    %21 = arith.addf %20, %19 : vector<24x128xf32>
    %22 = arith.divf %20, %21 : vector<24x128xf32>
    %23 = vector.extract_strided_slice %16 {offsets = [24, 0], sizes = [24, 128], strides = [1, 1]} : vector<96x128xf32> to vector<24x128xf32>
    %24 = arith.negf %23 : vector<24x128xf32>
    %25 = math.exp %24 : vector<24x128xf32>
    %cst_11 = arith.constant 1.000000e+00 : f32
    %26 = vector.broadcast %cst_11 : f32 to vector<24x128xf32>
    %27 = arith.addf %26, %25 : vector<24x128xf32>
    %28 = arith.divf %26, %27 : vector<24x128xf32>
    %29 = vector.extract_strided_slice %16 {offsets = [48, 0], sizes = [24, 128], strides = [1, 1]} : vector<96x128xf32> to vector<24x128xf32>
    %30 = math.tanh %29 : vector<24x128xf32>
    %31 = vector.extract_strided_slice %16 {offsets = [72, 0], sizes = [24, 128], strides = [1, 1]} : vector<96x128xf32> to vector<24x128xf32>
    %32 = arith.negf %31 : vector<24x128xf32>
    %33 = math.exp %32 : vector<24x128xf32>
    %cst_12 = arith.constant 1.000000e+00 : f32
    %34 = vector.broadcast %cst_12 : f32 to vector<24x128xf32>
    %35 = arith.addf %34, %33 : vector<24x128xf32>
    %36 = arith.divf %34, %35 : vector<24x128xf32>
    %37 = arith.mulf %28, %3 : vector<24x128xf32>
    %38 = arith.mulf %22, %30 : vector<24x128xf32>
    %39 = arith.addf %37, %38 : vector<24x128xf32>
    %40 = math.tanh %39 : vector<24x128xf32>
    %41 = arith.mulf %36, %40 : vector<24x128xf32>
    %42 = tpu.concatenate %41, %4 in 0 : vector<24x128xf32>, vector<24x128xf32> -> vector<48x128xf32>
    %c0_13 = arith.constant 0 : index
    %c0_14 = arith.constant 0 : index
    %43 = vector.load %arg5[%c0_13, %c0_14] : memref<96x48xf32, #tpu.memory_space<vmem>>, vector<96x48xf32>
    %cst_15 = arith.constant dense<0.000000e+00> : vector<96x128xf32>
    %44 = tpu.matmul %43, %42, %cst_15 {dimension_numbers = #tpu.dot_dimension_numbers<[1], [0], [0], [1], [0, 0, 1, 1], [], []>} : vector<96x48xf32>, vector<48x128xf32>, vector<96x128xf32> -> vector<96x128xf32>
    %45 = vector.broadcast %7 : vector<96x1xf32> to vector<96x128xf32>
    %46 = arith.addf %44, %45 : vector<96x128xf32>
    %47 = vector.extract_strided_slice %46 {offsets = [0, 0], sizes = [24, 128], strides = [1, 1]} : vector<96x128xf32> to vector<24x128xf32>
    %48 = arith.negf %47 : vector<24x128xf32>
    %49 = math.exp %48 : vector<24x128xf32>
    %cst_16 = arith.constant 1.000000e+00 : f32
    %50 = vector.broadcast %cst_16 : f32 to vector<24x128xf32>
    %51 = arith.addf %50, %49 : vector<24x128xf32>
    %52 = arith.divf %50, %51 : vector<24x128xf32>
    %53 = vector.extract_strided_slice %46 {offsets = [24, 0], sizes = [24, 128], strides = [1, 1]} : vector<96x128xf32> to vector<24x128xf32>
    %54 = arith.negf %53 : vector<24x128xf32>
    %55 = math.exp %54 : vector<24x128xf32>
    %cst_17 = arith.constant 1.000000e+00 : f32
    %56 = vector.broadcast %cst_17 : f32 to vector<24x128xf32>
    %57 = arith.addf %56, %55 : vector<24x128xf32>
    %58 = arith.divf %56, %57 : vector<24x128xf32>
    %59 = vector.extract_strided_slice %46 {offsets = [48, 0], sizes = [24, 128], strides = [1, 1]} : vector<96x128xf32> to vector<24x128xf32>
    %60 = math.tanh %59 : vector<24x128xf32>
    %61 = vector.extract_strided_slice %46 {offsets = [72, 0], sizes = [24, 128], strides = [1, 1]} : vector<96x128xf32> to vector<24x128xf32>
    %62 = arith.negf %61 : vector<24x128xf32>
    %63 = math.exp %62 : vector<24x128xf32>
    %cst_18 = arith.constant 1.000000e+00 : f32
    %64 = vector.broadcast %cst_18 : f32 to vector<24x128xf32>
    %65 = arith.addf %64, %63 : vector<24x128xf32>
    %66 = arith.divf %64, %65 : vector<24x128xf32>
    %67 = arith.mulf %58, %5 : vector<24x128xf32>
    %68 = arith.mulf %52, %60 : vector<24x128xf32>
    %69 = arith.addf %67, %68 : vector<24x128xf32>
    %70 = math.tanh %69 : vector<24x128xf32>
    %71 = arith.mulf %66, %70 : vector<24x128xf32>
    %c0_19 = arith.constant 0 : index
    %c0_20 = arith.constant 0 : index
    %72 = vector.load %arg7[%c0_19, %c0_20] : memref<24x1xf32, #tpu.memory_space<vmem>>, vector<24x1xf32>
    %73 = vector.broadcast %72 : vector<24x1xf32> to vector<24x128xf32>
    %74 = arith.mulf %71, %73 : vector<24x128xf32>
    %cst_21 = arith.constant dense<0.000000e+00> : vector<128xf32>
    %75 = vector.multi_reduction <add>, %74, %cst_21 [0] : vector<24x128xf32> to vector<128xf32>
    %76 = vector.shape_cast %75 : vector<128xf32> to vector<1x128xf32>
    %c0_22 = arith.constant 0 : index
    %c0_23 = arith.constant 0 : index
    %77 = vector.load %arg8[%c0_22, %c0_23] : memref<1x1xf32, #tpu.memory_space<vmem>>, vector<1x1xf32>
    %78 = vector.broadcast %77 : vector<1x1xf32> to vector<1x128xf32>
    %79 = arith.addf %76, %78 : vector<1x128xf32>
    %c0_24 = arith.constant 0 : index
    %c0_25 = arith.constant 0 : index
    %80 = vector.load %arg9[%c0_24, %c0_25] : memref<1x128xf32, #tpu.memory_space<vmem>>, vector<1x128xf32>
    tpu.vector_store %arg9[%c0_24, %c0_25], %79 {strides = array<i32>} : memref<1x128xf32, #tpu.memory_space<vmem>>, vector<1x128xf32>,
    %81 = tpu.concatenate %41, %39, %71, %69 in 0 : vector<24x128xf32>, vector<24x128xf32>, vector<24x128xf32>, vector<24x128xf32> -> vector<96x128xf32>
    %c0_26 = arith.constant 0 : index
    %c0_27 = arith.constant 0 : index
    %82 = vector.load %arg10[%c0_26, %c0_27] : memref<96x128xf32, #tpu.memory_space<vmem>>, vector<96x128xf32>
    tpu.vector_store %arg10[%c0_26, %c0_27], %81 {strides = array<i32>} : memref<96x128xf32, #tpu.memory_space<vmem>>, vector<96x128xf32>,
    return
  }
  func.func @transform_0(%arg0: i32) -> (i32, i32) {
    %c0_i32 = arith.constant 0 : i32
    %c0_i32_0 = arith.constant 0 : i32
    return %c0_i32, %arg0 : i32, i32
  }
  func.func @transform_1(%arg0: i32) -> (i32, i32) {
    %c0_i32 = arith.constant 0 : i32
    %c0_i32_0 = arith.constant 0 : i32
    return %c0_i32, %arg0 : i32, i32
  }
  func.func @transform_2(%arg0: i32) -> (i32, i32) {
    %c0_i32 = arith.constant 0 : i32
    %c0_i32_0 = arith.constant 0 : i32
    %c0_i32_1 = arith.constant 0 : i32
    return %c0_i32, %c0_i32_0 : i32, i32
  }
  func.func @transform_3(%arg0: i32) -> (i32, i32) {
    %c0_i32 = arith.constant 0 : i32
    %c0_i32_0 = arith.constant 0 : i32
    %c0_i32_1 = arith.constant 0 : i32
    return %c0_i32, %c0_i32_0 : i32, i32
  }
  func.func @transform_4(%arg0: i32) -> (i32, i32) {
    %c0_i32 = arith.constant 0 : i32
    %c0_i32_0 = arith.constant 0 : i32
    %c0_i32_1 = arith.constant 0 : i32
    return %c0_i32, %c0_i32_0 : i32, i32
  }
  func.func @transform_5(%arg0: i32) -> (i32, i32) {
    %c0_i32 = arith.constant 0 : i32
    %c0_i32_0 = arith.constant 0 : i32
    %c0_i32_1 = arith.constant 0 : i32
    return %c0_i32, %c0_i32_0 : i32, i32
  }
  func.func @transform_6(%arg0: i32) -> (i32, i32) {
    %c0_i32 = arith.constant 0 : i32
    %c0_i32_0 = arith.constant 0 : i32
    %c0_i32_1 = arith.constant 0 : i32
    return %c0_i32, %c0_i32_0 : i32, i32
  }
  func.func @transform_7(%arg0: i32) -> (i32, i32) {
    %c0_i32 = arith.constant 0 : i32
    %c0_i32_0 = arith.constant 0 : i32
    %c0_i32_1 = arith.constant 0 : i32
    return %c0_i32, %c0_i32_0 : i32, i32
  }
  func.func @transform_8(%arg0: i32) -> (i32, i32) {
    %c0_i32 = arith.constant 0 : i32
    %c0_i32_0 = arith.constant 0 : i32
    return %c0_i32, %arg0 : i32, i32
  }
  func.func @transform_9(%arg0: i32) -> (i32, i32) {
    %c0_i32 = arith.constant 0 : i32
    %c0_i32_0 = arith.constant 0 : i32
    return %c0_i32, %arg0 : i32, i32
  }
}

</mosaic_0001>

<llo_original>
// kernel: forward.1
$region0: #{forward.1}
  #allocation0 [shape = 'u32[]', space=smem, size = 0x4, offset = 0x4, fixed_abs, tag = 'smem constant byte address 0x4 - core index']
  #allocation1 [shape = 'u32[144,128]{1,0:T(1,128)}', space=vmem, size = 0x12000, scoped, tag = 'internal scratch']
  #allocation2 [shape = 'f32[1,1]{1,0:T(1,128)S(1)}', space=vmem, size = 0x200, scoped, tag = 'scoped memory for forward.1']
  %s0 = inlined_call_operand.hbm [shape: f32[1,128], index: 0, kind: input, shape index: {}]
  %s1 = inlined_call_operand.hbm [shape: f32[96,128], index: 1, kind: input, shape index: {}]
  %s2 = inlined_call_operand.hbm [shape: f32[96,1], index: 2, kind: input, shape index: {}]
  %s3 = inlined_call_operand.hbm [shape: f32[96,24], index: 3, kind: input, shape index: {}]
  %s4 = inlined_call_operand.hbm [shape: f32[96,48], index: 4, kind: input, shape index: {}]
  %s5 = inlined_call_operand.hbm [shape: f32[96,2], index: 5, kind: input, shape index: {}]
  %s6 = inlined_call_operand.hbm [shape: f32[24,1], index: 6, kind: input, shape index: {}]
  %s7 = inlined_call_operand.<no memory space> [shape: f32[1,1], index: 7, kind: input, shape index: {}]
  %s8 = inlined_call_operand.hbm [shape: f32[1,128], index: 8, kind: output, shape index: {0}]
  %s9 = inlined_call_operand.hbm [shape: f32[96,128], index: 9, kind: output, shape index: {1}]
  %10 = xla_tuple %s8, %s9
  %s11 = sld [smem:[#allocation0]]
  $region78: #{forward.1} parent=0
    _
  %s13 = ssub.s32 1, %s11
  %s14 = scalar_select 0, %s13, %s11
  %v15 = vstv %s7
  %16 = vst [vmem:[#allocation2] sm:$0x1] %v15
  $region1: #{forward.1} parent=0
    #allocation3 [shape = 'u8[512]{0}', space=vmem, size = 0x400, scoped, tag = 'input window, operand 0, single buffered']
    #allocation4 [shape = 's32[1]{0}', space=sflag, size = 0x4, scoped, tag = 'scoped memory for forward.1']
    #allocation5 [shape = 's32[1]{0}', space=sflag, size = 0x4, scoped, tag = 'scoped memory for forward.1']
    #allocation6 [shape = 'u8[49152]{0}', space=vmem, size = 0xc000, scoped, tag = 'input window, operand 1, single buffered']
    #allocation7 [shape = 's32[1]{0}', space=sflag, size = 0x4, scoped, tag = 'scoped memory for forward.1']
    #allocation8 [shape = 'u8[49152]{0}', space=vmem, size = 0xc000, scoped, tag = 'input window, operand 2, single buffered']
    #allocation9 [shape = 'u8[49152]{0}', space=vmem, size = 0xc000, scoped, tag = 'input window, operand 3, single buffered']
    #allocation10 [shape = 's32[1]{0}', space=sflag, size = 0x4, scoped, tag = 'scoped memory for forward.1']
    #allocation11 [shape = 'u8[49152]{0}', space=vmem, size = 0xc000, scoped, tag = 'input window, operand 4, single buffered']
    #allocation12 [shape = 'u8[49152]{0}', space=vmem, size = 0xc000, scoped, tag = 'input window, operand 5, single buffered']
    #allocation13 [shape = 's32[1]{0}', space=sflag, size = 0x4, scoped, tag = 'scoped memory for forward.1']
    #allocation14 [shape = 'u8[12288]{0}', space=vmem, size = 0x3000, scoped, tag = 'input window, operand 6, single buffered']
    #allocation15 [shape = 'u8[512]{0}', space=vmem, size = 0x400, scoped, tag = 'output window, operand 0, single buffered']
    #allocation16 [shape = 'u8[49152]{0}', space=vmem, size = 0xc000, scoped, tag = 'output window, operand 1, single buffered']
    #allocation17 [shape = 's32[1]{0}', space=sflag, size = 0x4, scoped, tag = 'scoped memory for forward.1']
    %17 = vsyncpa [#allocation4], 0
    %18 = vsyncpa [#allocation7], 0
    %19 = vsyncpa [#allocation10], 0
    %20 = vsyncpa [#allocation13], 0
    %21 = vsyncpa [#allocation5], 0
    %22 = vsyncpa [#allocation17], 0
    // Predicated region
    $region2: #{forward.1} parent=1 // pred_check
      _
    $region3: #{forward.1} parent=1 // pred_check_branch
      %24 = sbr.rel (0) target = $region5
    $region4: #{forward.1} parent=1 // pred_region
      %s26 = ssub.s32 16, 16
      %27 = vsyncadd [#allocation4], %s26
      %s29 = sshll.u32 [#allocation3], 4
      %s30 = int_to_ptr.vmem [resolvable:$true] %s29
      %32 = dma.hbm_to_vmem [thread:$0]  %s0, 16, %s30, [#allocation4]
    $region5: #{forward.1} parent=1 // pred_fallthru
      _
    // Predicated region
    $region6: #{forward.1} parent=1 // pred_check
      _
    $region7: #{forward.1} parent=1 // pred_check_branch
      %34 = sbr.rel (0) target = $region9
    $region8: #{forward.1} parent=1 // pred_region
      %s36 = ssub.s32 1536, 1536
      %37 = vsyncadd [#allocation7], %s36
      %s38 = sshll.u32 [#allocation6], 4
      %s39 = int_to_ptr.vmem [resolvable:$true] %s38
      %44 = dma.hbm_to_vmem [thread:$0]  %s1, 1536, %s39, [#allocation7], 128, 128, 8
    $region9: #{forward.1} parent=1 // pred_fallthru
      _
    // Predicated region
    $region10: #{forward.1} parent=1 // pred_check
      _
    $region11: #{forward.1} parent=1 // pred_check_branch
      %46 = sbr.rel (0) target = $region13
    $region12: #{forward.1} parent=1 // pred_region
      %s48 = ssub.s32 1536, 1536
      %49 = vsyncadd [#allocation7], %s48
      %s50 = sshll.u32 [#allocation8], 4
      %s51 = int_to_ptr.vmem [resolvable:$true] %s50
      %56 = dma.hbm_to_vmem [thread:$0]  %s2, 1536, %s51, [#allocation7], 128, 128, 8
    $region13: #{forward.1} parent=1 // pred_fallthru
      _
    // Predicated region
    $region14: #{forward.1} parent=1 // pred_check
      _
    $region15: #{forward.1} parent=1 // pred_check_branch
      %58 = sbr.rel (0) target = $region17
    $region16: #{forward.1} parent=1 // pred_region
      %s60 = ssub.s32 1536, 1536
      %61 = vsyncadd [#allocation10], %s60
      %s62 = sshll.u32 [#allocation9], 4
      %s63 = int_to_ptr.vmem [resolvable:$true] %s62
      %68 = dma.hbm_to_vmem [thread:$0]  %s3, 1536, %s63, [#allocation10], 128, 128, 8
    $region17: #{forward.1} parent=1 // pred_fallthru
      _
    // Predicated region
    $region18: #{forward.1} parent=1 // pred_check
      _
    $region19: #{forward.1} parent=1 // pred_check_branch
      %70 = sbr.rel (0) target = $region21
    $region20: #{forward.1} parent=1 // pred_region
      %s72 = ssub.s32 1536, 1536
      %73 = vsyncadd [#allocation10], %s72
      %s74 = sshll.u32 [#allocation11], 4
      %s75 = int_to_ptr.vmem [resolvable:$true] %s74
      %80 = dma.hbm_to_vmem [thread:$0]  %s4, 1536, %s75, [#allocation10], 128, 128, 8
    $region21: #{forward.1} parent=1 // pred_fallthru
      _
    // Predicated region
    $region22: #{forward.1} parent=1 // pred_check
      _
    $region23: #{forward.1} parent=1 // pred_check_branch
      %82 = sbr.rel (0) target = $region25
    $region24: #{forward.1} parent=1 // pred_region
      %s84 = ssub.s32 1536, 1536
      %85 = vsyncadd [#allocation13], %s84
      %s86 = sshll.u32 [#allocation12], 4
      %s87 = int_to_ptr.vmem [resolvable:$true] %s86
      %92 = dma.hbm_to_vmem [thread:$0]  %s5, 1536, %s87, [#allocation13], 128, 128, 8
    $region25: #{forward.1} parent=1 // pred_fallthru
      _
    // Predicated region
    $region26: #{forward.1} parent=1 // pred_check
      _
    $region27: #{forward.1} parent=1 // pred_check_branch
      %94 = sbr.rel (0) target = $region29
    $region28: #{forward.1} parent=1 // pred_region
      %s96 = ssub.s32 384, 384
      %97 = vsyncadd [#allocation13], %s96
      %s98 = sshll.u32 [#allocation14], 4
      %s99 = int_to_ptr.vmem [resolvable:$true] %s98
      %104 = dma.hbm_to_vmem [thread:$0]  %s6, 384, %s99, [#allocation13], 128, 128, 8
    $region29: #{forward.1} parent=1 // pred_fallthru
      _
    // Predicated region
    $region30: #{forward.1} parent=1 // pred_check
      _
    $region31: #{forward.1} parent=1 // pred_check_branch
      %106 = sbr.rel (0) target = $region33
    $region32: #{forward.1} parent=1 // pred_region
      _
    $region33: #{forward.1} parent=1 // pred_fallthru
      _
    // Predicated region
    $region34: #{forward.1} parent=1 // pred_check
      _
    $region35: #{forward.1} parent=1 // pred_check_branch
      %108 = sbr.rel (0) target = $region37
    $region36: #{forward.1} parent=1 // pred_region
      %109 = dma.done [#allocation4], 16
    $region37: #{forward.1} parent=1 // pred_fallthru
      _
    // Predicated region
    $region38: #{forward.1} parent=1 // pred_check
      _
    $region39: #{forward.1} parent=1 // pred_check_branch
      %111 = sbr.rel (0) target = $region41
    $region40: #{forward.1} parent=1 // pred_region
      %112 = dma.done [#allocation7], 1536
    $region41: #{forward.1} parent=1 // pred_fallthru
      _
    // Predicated region
    $region42: #{forward.1} parent=1 // pred_check
      _
    $region43: #{forward.1} parent=1 // pred_check_branch
      %114 = sbr.rel (0) target = $region45
    $region44: #{forward.1} parent=1 // pred_region
      %115 = dma.done [#allocation7], 1536
    $region45: #{forward.1} parent=1 // pred_fallthru
      _
    // Predicated region
    $region46: #{forward.1} parent=1 // pred_check
      _
    $region47: #{forward.1} parent=1 // pred_check_branch
      %117 = sbr.rel (0) target = $region49
    $region48: #{forward.1} parent=1 // pred_region
      %118 = dma.done [#allocation10], 1536
    $region49: #{forward.1} parent=1 // pred_fallthru
      _
    // Predicated region
    $region50: #{forward.1} parent=1 // pred_check
      _
    $region51: #{forward.1} parent=1 // pred_check_branch
      %120 = sbr.rel (0) target = $region53
    $region52: #{forward.1} parent=1 // pred_region
      %121 = dma.done [#allocation10], 1536
    $region53: #{forward.1} parent=1 // pred_fallthru
      _
    // Predicated region
    $region54: #{forward.1} parent=1 // pred_check
      _
    $region55: #{forward.1} parent=1 // pred_check_branch
      %123 = sbr.rel (0) target = $region57
    $region56: #{forward.1} parent=1 // pred_region
      %124 = dma.done [#allocation13], 1536
    $region57: #{forward.1} parent=1 // pred_fallthru
      _
    // Predicated region
    $region58: #{forward.1} parent=1 // pred_check
      _
    $region59: #{forward.1} parent=1 // pred_check_branch
      %126 = sbr.rel (0) target = $region61
    $region60: #{forward.1} parent=1 // pred_region
      %127 = dma.done [#allocation13], 384
    $region61: #{forward.1} parent=1 // pred_fallthru
      _
    %v128 = vld [vmem:[#allocation3] sm:$0x1]
    %v129 = vld [vmem:[#allocation6] sm:$0xff]
    %v130 = vld [vmem:[#allocation6 + $0x8] sm:$0xff]
    %v131 = vld [vmem:[#allocation6 + $0x10] sm:$0xff]
    %v132 = vld [vmem:[#allocation6 + $0x18] sm:$0xff]
    %v133 = vld [vmem:[#allocation6 + $0x20] sm:$0xff]
    %v134 = vld [vmem:[#allocation6 + $0x28] sm:$0xff]
    %v135 = vld [vmem:[#allocation6 + $0x30] sm:$0xff]
    %v136 = vld [vmem:[#allocation6 + $0x38] sm:$0xff]
    %v137 = vld [vmem:[#allocation6 + $0x40] sm:$0xff]
    %v138 = vld [vmem:[#allocation6 + $0x48] sm:$0xff]
    %v139 = vld [vmem:[#allocation6 + $0x50] sm:$0xff]
    %v140 = vld [vmem:[#allocation6 + $0x58] sm:$0xff]
    %v141 = vld [vmem:[#allocation12] sm:$0xff]
    %v142 = vld [vmem:[#allocation12 + $0x8] sm:$0xff]
    %v143 = vld [vmem:[#allocation12 + $0x10] sm:$0xff]
    %v144 = vld [vmem:[#allocation12 + $0x18] sm:$0xff]
    %v145 = vld [vmem:[#allocation12 + $0x20] sm:$0xff]
    %v146 = vld [vmem:[#allocation12 + $0x28] sm:$0xff]
    %v147 = vld [vmem:[#allocation12 + $0x30] sm:$0xff]
    %v148 = vld [vmem:[#allocation12 + $0x38] sm:$0xff]
    %v149 = vld [vmem:[#allocation12 + $0x40] sm:$0xff]
    %v150 = vld [vmem:[#allocation12 + $0x48] sm:$0xff]
    %v151 = vld [vmem:[#allocation12 + $0x50] sm:$0xff]
    %v152 = vld [vmem:[#allocation12 + $0x58] sm:$0xff]
    %v153 = vld [vmem:[#allocation8] sm:$0xff]
    %v154 = vld [vmem:[#allocation8 + $0x8] sm:$0xff]
    %v155 = vld [vmem:[#allocation8 + $0x10] sm:$0xff]
    %v156 = vld [vmem:[#allocation8 + $0x18] sm:$0xff]
    %v157 = vld [vmem:[#allocation8 + $0x20] sm:$0xff]
    %v158 = vld [vmem:[#allocation8 + $0x28] sm:$0xff]
    %v159 = vld [vmem:[#allocation8 + $0x30] sm:$0xff]
    %v160 = vld [vmem:[#allocation8 + $0x38] sm:$0xff]
    %v161 = vld [vmem:[#allocation8 + $0x40] sm:$0xff]
    %v162 = vld [vmem:[#allocation8 + $0x48] sm:$0xff]
    %v163 = vld [vmem:[#allocation8 + $0x50] sm:$0xff]
    %v164 = vld [vmem:[#allocation8 + $0x58] sm:$0xff]
    %166 = vset.pattern.permute.xlu0 0
    %167 = vperm.xlu0 %166, %v153
    %v168 = vpop.permute.xlu0 %167
    %171 = vset.pattern.permute.xlu0 0
    %172 = vperm.xlu0 %171, %v154
    %v173 = vpop.permute.xlu0 %172
    %176 = vset.pattern.permute.xlu0 0
    %177 = vperm.xlu0 %176, %v155
    %v178 = vpop.permute.xlu0 %177
    %181 = vset.pattern.permute.xlu0 0
    %182 = vperm.xlu0 %181, %v156
    %v183 = vpop.permute.xlu0 %182
    %186 = vset.pattern.permute.xlu0 0
    %187 = vperm.xlu0 %186, %v157
    %v188 = vpop.permute.xlu0 %187
    %191 = vset.pattern.permute.xlu0 0
    %192 = vperm.xlu0 %191, %v158
    %v193 = vpop.permute.xlu0 %192
    %196 = vset.pattern.permute.xlu0 0
    %197 = vperm.xlu0 %196, %v159
    %v198 = vpop.permute.xlu0 %197
    %201 = vset.pattern.permute.xlu0 0
    %202 = vperm.xlu0 %201, %v160
    %v203 = vpop.permute.xlu0 %202
    %206 = vset.pattern.permute.xlu0 0
    %207 = vperm.xlu0 %206, %v161
    %v208 = vpop.permute.xlu0 %207
    %211 = vset.pattern.permute.xlu0 0
    %212 = vperm.xlu0 %211, %v162
    %v213 = vpop.permute.xlu0 %212
    %216 = vset.pattern.permute.xlu0 0
    %217 = vperm.xlu0 %216, %v163
    %v218 = vpop.permute.xlu0 %217
    %221 = vset.pattern.permute.xlu0 0
    %222 = vperm.xlu0 %221, %v164
    %v223 = vpop.permute.xlu0 %222
    %v226 = vlaneseq
    %v227 = vshrl.u32 %v226, 7
    %v228 = vsub.s32 0, %v227
    %v229 = vrot.slane %v128, %v228
    %v231 = vmul.f32 %v168, %v229
    %v232 = vmul.f32 %v173, %v229
    %v233 = vmul.f32 %v178, %v229
    %v234 = vmul.f32 %v183, %v229
    %v235 = vmul.f32 %v188, %v229
    %v236 = vmul.f32 %v193, %v229
    %v237 = vmul.f32 %v198, %v229
    %v238 = vmul.f32 %v203, %v229
    %v239 = vmul.f32 %v208, %v229
    %v240 = vmul.f32 %v213, %v229
    %v241 = vmul.f32 %v218, %v229
    %v242 = vmul.f32 %v223, %v229
    %v243 = vld [vmem:[#allocation9] sm:$0xff]
    %v244 = vld [vmem:[#allocation9 + $0x8] sm:$0xff]
    %v245 = vld [vmem:[#allocation9 + $0x10] sm:$0xff]
    %v246 = vld [vmem:[#allocation9 + $0x18] sm:$0xff]
    %v247 = vld [vmem:[#allocation9 + $0x20] sm:$0xff]
    %v248 = vld [vmem:[#allocation9 + $0x28] sm:$0xff]
    %v249 = vld [vmem:[#allocation9 + $0x30] sm:$0xff]
    %v250 = vld [vmem:[#allocation9 + $0x38] sm:$0xff]
    %v251 = vld [vmem:[#allocation9 + $0x40] sm:$0xff]
    %v252 = vld [vmem:[#allocation9 + $0x48] sm:$0xff]
    %v253 = vld [vmem:[#allocation9 + $0x50] sm:$0xff]
    %v254 = vld [vmem:[#allocation9 + $0x58] sm:$0xff]
    %vm255 = vcmask 195584
    %v257 = vsel %vm255, %v243, 0
    %v260 = vsel %vm255, %v244, 0
    %v263 = vsel %vm255, %v245, 0
    %v266 = vsel %vm255, %v246, 0
    %v269 = vsel %vm255, %v247, 0
    %v272 = vsel %vm255, %v248, 0
    %v275 = vsel %vm255, %v249, 0
    %v278 = vsel %vm255, %v250, 0
    %v281 = vsel %vm255, %v251, 0
    %v284 = vsel %vm255, %v252, 0
    %v287 = vsel %vm255, %v253, 0
    %v290 = vsel %vm255, %v254, 0
    %292 = vmatprep.subr.mxu0 0.0
    %293 = vmatpush1.msra.mxu0 %v129
    %294 = vmatprep.subr.mxu0 0.0
    %295 = vmatpush1.msra.mxu0 %v130
    %296 = vmatprep.subr.mxu0 0.0
    %297 = vmatpush1.msra.mxu0 %v131
    %298 = vmatprep.subr.mxu0 0.0
    %299 = vmatpush1.msra.mxu0 0.0
    %300 = vmatprep.subr.mxu0 0.0
    %301 = vmatpush1.msra.mxu0 0.0
    %302 = vmatprep.subr.mxu0 0.0
    %303 = vmatpush1.msra.mxu0 0.0
    %304 = vmatprep.subr.mxu0 0.0
    %305 = vmatpush1.msra.mxu0 0.0
    %306 = vmatprep.subr.mxu0 0.0
    %307 = vmatpush1.msra.mxu0 0.0
    %308 = vmatprep.subr.mxu0 0.0
    %309 = vmatpush1.msra.mxu0 0.0
    %310 = vmatprep.subr.mxu0 0.0
    %311 = vmatpush1.msra.mxu0 0.0
    %312 = vmatprep.subr.mxu0 0.0
    %313 = vmatpush1.msra.mxu0 0.0
    %314 = vmatprep.subr.mxu0 0.0
    %315 = vmatpush1.msra.mxu0 0.0
    %316 = vmatprep.subr.mxu0 0.0
    %317 = vmatpush1.msra.mxu0 0.0
    %318 = vmatprep.subr.mxu0 0.0
    %319 = vmatpush1.msra.mxu0 0.0
    %320 = vmatprep.subr.mxu0 0.0
    %321 = vmatpush1.msra.mxu0 0.0
    %322 = vmatprep.subr.mxu0 0.0
    %323 = vmatpush1.msra.mxu0 0.0
    %324 = vmatprep.subr.mxu0 0.0
    %325 = vmatpush1.msra.mxu0 0.0
    %326 = vmatprep.subr.mxu0 0.0
    %327 = vmatpush1.msra.mxu0 0.0
    %328 = vmatprep.subr.mxu0 0.0
    %329 = vmatpush1.msra.mxu0 0.0
    %330 = vmatprep.subr.mxu0 0.0
    %331 = vmatpush1.msra.mxu0 0.0
    %332 = vmatprep.subr.mxu0 0.0
    %333 = vmatpush1.msra.mxu0 0.0
    %334 = vmatprep.subr.mxu0 0.0
    %335 = vmatpush1.msra.mxu0 0.0
    %336 = vmatprep.subr.mxu0 0.0
    %337 = vmatpush1.msra.mxu0 0.0
    %338 = vmatprep.subr.mxu0 0.0
    %339 = vmatpush1.msra.mxu0 0.0
    %340 = vmatprep.subr.mxu0 0.0
    %341 = vmatpush1.msra.mxu0 0.0
    %342 = vmatprep.subr.mxu0 0.0
    %343 = vmatpush1.msra.mxu0 0.0
    %344 = vmatprep.subr.mxu0 0.0
    %345 = vmatpush1.msra.mxu0 0.0
    %346 = vmatprep.subr.mxu0 0.0
    %347 = vmatpush1.msra.mxu0 0.0
    %348 = vmatprep.subr.mxu0 0.0
    %349 = vmatpush1.msra.mxu0 0.0
    %350 = vmatprep.subr.mxu0 0.0
    %351 = vmatpush1.msra.mxu0 0.0
    %352 = vmatprep.subr.mxu0 0.0
    %353 = vmatpush1.msra.mxu0 0.0
    %354 = vmatprep.subr.mxu0 0.0
    %355 = vmatpush1.msra.mxu0 0.0
    %356 = vmatprep.mubr.f32.mxu0 0.0
    %357 = vmatmul.mubr.f32.gmra.mrb[0].mxu0 %v257
    %v358 = vpop.f32.mrb[0].mxu0
    %v359 = vadd.f32 %v231, %v358
    %v360 = vpop.f32.mrb[0].mxu0
    %361 = vmatprep.mubr.f32.mxu0 0.0
    %362 = vmatmul.mubr.f32.gmra.mrb[0].mxu0 %v260
    %v363 = vpop.f32.mrb[0].mxu0
    %v364 = vadd.f32 %v232, %v363
    %v365 = vpop.f32.mrb[0].mxu0
    %366 = vmatprep.mubr.f32.mxu0 0.0
    %367 = vmatmul.mubr.f32.gmra.mrb[0].mxu0 %v263
    %v368 = vpop.f32.mrb[0].mxu0
    %v369 = vadd.f32 %v233, %v368
    %v370 = vpop.f32.mrb[0].mxu0
    %371 = vmatprep.mubr.f32.mxu0 0.0
    %372 = vmatmul.mubr.f32.gmra.mrb[0].mxu0 %v266
    %v373 = vpop.f32.mrb[0].mxu0
    %v374 = vadd.f32 %v234, %v373
    %v375 = vpop.f32.mrb[0].mxu0
    %376 = vmatprep.mubr.f32.mxu0 0.0
    %377 = vmatmul.mubr.f32.gmra.mrb[0].mxu0 %v269
    %v378 = vpop.f32.mrb[0].mxu0
    %v379 = vadd.f32 %v235, %v378
    %v380 = vpop.f32.mrb[0].mxu0
    %381 = vmatprep.mubr.f32.mxu0 0.0
    %382 = vmatmul.mubr.f32.gmra.mrb[0].mxu0 %v272
    %v383 = vpop.f32.mrb[0].mxu0
    %v384 = vadd.f32 %v236, %v383
    %v385 = vpop.f32.mrb[0].mxu0
    %386 = vmatprep.mubr.f32.mxu0 0.0
    %387 = vmatmul.mubr.f32.gmra.mrb[0].mxu0 %v275
    %v388 = vpop.f32.mrb[0].mxu0
    %v389 = vadd.f32 %v237, %v388
    %v390 = vpop.f32.mrb[0].mxu0
    %391 = vmatprep.mubr.f32.mxu0 0.0
    %392 = vmatmul.mubr.f32.gmra.mrb[0].mxu0 %v278
    %v393 = vpop.f32.mrb[0].mxu0
    %v394 = vadd.f32 %v238, %v393
    %v395 = vpop.f32.mrb[0].mxu0
    %396 = vmatprep.mubr.f32.mxu0 0.0
    %397 = vmatmul.mubr.f32.gmra.mrb[0].mxu0 %v281
    %v398 = vpop.f32.mrb[0].mxu0
    %v399 = vadd.f32 %v239, %v398
    %v400 = vpop.f32.mrb[0].mxu0
    %401 = vmatprep.mubr.f32.mxu0 0.0
    %402 = vmatmul.mubr.f32.gmra.mrb[0].mxu0 %v284
    %v403 = vpop.f32.mrb[0].mxu0
    %v404 = vadd.f32 %v240, %v403
    %v405 = vpop.f32.mrb[0].mxu0
    %406 = vmatprep.mubr.f32.mxu0 0.0
    %407 = vmatmul.mubr.f32.gmra.mrb[0].mxu0 %v287
    %v408 = vpop.f32.mrb[0].mxu0
    %v409 = vadd.f32 %v241, %v408
    %v410 = vpop.f32.mrb[0].mxu0
    %411 = vmatprep.mubr.f32.mxu0 0.0
    %412 = vmatmul.mubr.f32.gmra.mrb[0].mxu0 %v290
    %v413 = vpop.f32.mrb[0].mxu0
    %v414 = vadd.f32 %v242, %v413
    %v415 = vpop.f32.mrb[0].mxu0
    %416 = vdwg.mxu0
    %418 = vset.pattern.permute.xlu0 0
    %419 = vperm.xlu0 %418, %v141
    %v420 = vpop.permute.xlu0 %419
    %423 = vset.pattern.permute.xlu0 0
    %424 = vperm.xlu0 %423, %v142
    %v425 = vpop.permute.xlu0 %424
    %428 = vset.pattern.permute.xlu0 0
    %429 = vperm.xlu0 %428, %v143
    %v430 = vpop.permute.xlu0 %429
    %433 = vset.pattern.permute.xlu0 0
    %434 = vperm.xlu0 %433, %v144
    %v435 = vpop.permute.xlu0 %434
    %438 = vset.pattern.permute.xlu0 0
    %439 = vperm.xlu0 %438, %v145
    %v440 = vpop.permute.xlu0 %439
    %443 = vset.pattern.permute.xlu0 0
    %444 = vperm.xlu0 %443, %v146
    %v445 = vpop.permute.xlu0 %444
    %448 = vset.pattern.permute.xlu0 0
    %449 = vperm.xlu0 %448, %v147
    %v450 = vpop.permute.xlu0 %449
    %453 = vset.pattern.permute.xlu0 0
    %454 = vperm.xlu0 %453, %v148
    %v455 = vpop.permute.xlu0 %454
    %458 = vset.pattern.permute.xlu0 0
    %459 = vperm.xlu0 %458, %v149
    %v460 = vpop.permute.xlu0 %459
    %463 = vset.pattern.permute.xlu0 0
    %464 = vperm.xlu0 %463, %v150
    %v465 = vpop.permute.xlu0 %464
    %468 = vset.pattern.permute.xlu0 0
    %469 = vperm.xlu0 %468, %v151
    %v470 = vpop.permute.xlu0 %469
    %473 = vset.pattern.permute.xlu0 0
    %474 = vperm.xlu0 %473, %v152
    %v475 = vpop.permute.xlu0 %474
    %v477 = vadd.f32 %v359, %v420
    %v478 = vadd.f32 %v364, %v425
    %v479 = vadd.f32 %v369, %v430
    %v480 = vadd.f32 %v374, %v435
    %v481 = vadd.f32 %v379, %v440
    %v482 = vadd.f32 %v384, %v445
    %v483 = vadd.f32 %v389, %v450
    %v484 = vadd.f32 %v394, %v455
    %v485 = vadd.f32 %v399, %v460
    %v486 = vadd.f32 %v404, %v465
    %v487 = vadd.f32 %v409, %v470
    %v488 = vadd.f32 %v414, %v475
    %v489 = vxor.u32 %v477, 2147483648
    %v490 = vxor.u32 %v478, 2147483648
    %v491 = vxor.u32 %v479, 2147483648
    %v492 = vmul.f32 %v489, 1.442695
    %v493 = vpow.pop %v492
    %v494 = vmul.f32 %v490, 1.442695
    %v495 = vpow.pop %v494
    %v496 = vmul.f32 %v491, 1.442695
    %v497 = vpow.pop %v496
    %v498 = vadd.f32 %v493, 1.0
    %v499 = vadd.f32 %v495, 1.0
    %v500 = vadd.f32 %v497, 1.0
    %v501 = vrcp.pop %v498
    %v502 = vmul.f32 1.0, %v501
    %v503 = vrcp.pop %v499
    %v504 = vmul.f32 1.0, %v503
    %v505 = vrcp.pop %v500
    %v506 = vmul.f32 1.0, %v505
    %v507 = vxor.u32 %v480, 2147483648
    %v508 = vxor.u32 %v481, 2147483648
    %v509 = vxor.u32 %v482, 2147483648
    %v510 = vmul.f32 %v507, 1.442695
    %v511 = vpow.pop %v510
    %v512 = vmul.f32 %v508, 1.442695
    %v513 = vpow.pop %v512
    %v514 = vmul.f32 %v509, 1.442695
    %v515 = vpow.pop %v514
    %v516 = vadd.f32 %v511, 1.0
    %v517 = vadd.f32 %v513, 1.0
    %v518 = vadd.f32 %v515, 1.0
    %v519 = vrcp.pop %v516
    %v520 = vmul.f32 1.0, %v519
    %v521 = vrcp.pop %v517
    %v522 = vmul.f32 1.0, %v521
    %v523 = vrcp.pop %v518
    %v524 = vmul.f32 1.0, %v523
    %v525 = vtanh.pop %v483
    %v526 = vtanh.pop %v484
    %v527 = vtanh.pop %v485
    %v528 = vxor.u32 %v486, 2147483648
    %v529 = vxor.u32 %v487, 2147483648
    %v530 = vxor.u32 %v488, 2147483648
    %v531 = vmul.f32 %v528, 1.442695
    %v532 = vpow.pop %v531
    %v533 = vmul.f32 %v529, 1.442695
    %v534 = vpow.pop %v533
    %v535 = vmul.f32 %v530, 1.442695
    %v536 = vpow.pop %v535
    %v537 = vadd.f32 %v532, 1.0
    %v538 = vadd.f32 %v534, 1.0
    %v539 = vadd.f32 %v536, 1.0
    %v540 = vrcp.pop %v537
    %v541 = vmul.f32 1.0, %v540
    %v542 = vrcp.pop %v538
    %v543 = vmul.f32 1.0, %v542
    %v544 = vrcp.pop %v539
    %v545 = vmul.f32 1.0, %v544
    %v546 = vmul.f32 %v520, %v132
    %v547 = vmul.f32 %v522, %v133
    %v548 = vmul.f32 %v524, %v134
    %v549 = vmul.f32 %v502, %v525
    %v550 = vmul.f32 %v504, %v526
    %v551 = vmul.f32 %v506, %v527
    %v552 = vadd.f32 %v546, %v549
    %v553 = vadd.f32 %v547, %v550
    %v554 = vadd.f32 %v548, %v551
    %v555 = vtanh.pop %v552
    %v556 = vtanh.pop %v553
    %v557 = vtanh.pop %v554
    %v558 = vmul.f32 %v541, %v555
    %v559 = vmul.f32 %v543, %v556
    %v560 = vmul.f32 %v545, %v557
    %v561 = vld [vmem:[#allocation11] sm:$0xff]
    %v562 = vld [vmem:[#allocation11 + $0x8] sm:$0xff]
    %v563 = vld [vmem:[#allocation11 + $0x10] sm:$0xff]
    %v564 = vld [vmem:[#allocation11 + $0x18] sm:$0xff]
    %v565 = vld [vmem:[#allocation11 + $0x20] sm:$0xff]
    %v566 = vld [vmem:[#allocation11 + $0x28] sm:$0xff]
    %v567 = vld [vmem:[#allocation11 + $0x30] sm:$0xff]
    %v568 = vld [vmem:[#allocation11 + $0x38] sm:$0xff]
    %v569 = vld [vmem:[#allocation11 + $0x40] sm:$0xff]
    %v570 = vld [vmem:[#allocation11 + $0x48] sm:$0xff]
    %v571 = vld [vmem:[#allocation11 + $0x50] sm:$0xff]
    %v572 = vld [vmem:[#allocation11 + $0x58] sm:$0xff]
    %573 = vset.pattern.permute.xlu0 1
    %574 = vperm.xlu0 %573, %v141
    %v575 = vpop.permute.xlu0 %574
    %577 = vset.pattern.permute.xlu0 1
    %578 = vperm.xlu0 %577, %v142
    %v579 = vpop.permute.xlu0 %578
    %581 = vset.pattern.permute.xlu0 1
    %582 = vperm.xlu0 %581, %v143
    %v583 = vpop.permute.xlu0 %582
    %585 = vset.pattern.permute.xlu0 1
    %586 = vperm.xlu0 %585, %v144
    %v587 = vpop.permute.xlu0 %586
    %589 = vset.pattern.permute.xlu0 1
    %590 = vperm.xlu0 %589, %v145
    %v591 = vpop.permute.xlu0 %590
    %593 = vset.pattern.permute.xlu0 1
    %594 = vperm.xlu0 %593, %v146
    %v595 = vpop.permute.xlu0 %594
    %597 = vset.pattern.permute.xlu0 1
    %598 = vperm.xlu0 %597, %v147
    %v599 = vpop.permute.xlu0 %598
    %601 = vset.pattern.permute.xlu0 1
    %602 = vperm.xlu0 %601, %v148
    %v603 = vpop.permute.xlu0 %602
    %605 = vset.pattern.permute.xlu0 1
    %606 = vperm.xlu0 %605, %v149
    %v607 = vpop.permute.xlu0 %606
    %609 = vset.pattern.permute.xlu0 1
    %610 = vperm.xlu0 %609, %v150
    %v611 = vpop.permute.xlu0 %610
    %613 = vset.pattern.permute.xlu0 1
    %614 = vperm.xlu0 %613, %v151
    %v615 = vpop.permute.xlu0 %614
    %617 = vset.pattern.permute.xlu0 1
    %618 = vperm.xlu0 %617, %v152
    %v619 = vpop.permute.xlu0 %618
    %vm621 = vcmask 392192
    %v623 = vsel %vm621, %v561, 0
    %v626 = vsel %vm621, %v562, 0
    %v629 = vsel %vm621, %v563, 0
    %v632 = vsel %vm621, %v564, 0
    %v635 = vsel %vm621, %v565, 0
    %v638 = vsel %vm621, %v566, 0
    %v641 = vsel %vm621, %v567, 0
    %v644 = vsel %vm621, %v568, 0
    %v647 = vsel %vm621, %v569, 0
    %v650 = vsel %vm621, %v570, 0
    %v653 = vsel %vm621, %v571, 0
    %v656 = vsel %vm621, %v572, 0
    %658 = vmatprep.subr.mxu0 0.0
    %659 = vmatpush1.msra.mxu0 %v558
    %660 = vmatprep.subr.mxu0 0.0
    %661 = vmatpush1.msra.mxu0 %v559
    %662 = vmatprep.subr.mxu0 0.0
    %663 = vmatpush1.msra.mxu0 %v560
    %664 = vmatprep.subr.mxu0 0.0
    %665 = vmatpush1.msra.mxu0 %v135
    %666 = vmatprep.subr.mxu0 0.0
    %667 = vmatpush1.msra.mxu0 %v136
    %668 = vmatprep.subr.mxu0 0.0
    %669 = vmatpush1.msra.mxu0 %v137
    %670 = vmatprep.subr.mxu0 0.0
    %671 = vmatpush1.msra.mxu0 0.0
    %672 = vmatprep.subr.mxu0 0.0
    %673 = vmatpush1.msra.mxu0 0.0
    %674 = vmatprep.subr.mxu0 0.0
    %675 = vmatpush1.msra.mxu0 0.0
    %676 = vmatprep.subr.mxu0 0.0
    %677 = vmatpush1.msra.mxu0 0.0
    %678 = vmatprep.subr.mxu0 0.0
    %679 = vmatpush1.msra.mxu0 0.0
    %680 = vmatprep.subr.mxu0 0.0
    %681 = vmatpush1.msra.mxu0 0.0
    %682 = vmatprep.subr.mxu0 0.0
    %683 = vmatpush1.msra.mxu0 0.0
    %684 = vmatprep.subr.mxu0 0.0
    %685 = vmatpush1.msra.mxu0 0.0
    %686 = vmatprep.subr.mxu0 0.0
    %687 = vmatpush1.msra.mxu0 0.0
    %688 = vmatprep.subr.mxu0 0.0
    %689 = vmatpush1.msra.mxu0 0.0
    %690 = vmatprep.subr.mxu0 0.0
    %691 = vmatpush1.msra.mxu0 0.0
    %692 = vmatprep.subr.mxu0 0.0
    %693 = vmatpush1.msra.mxu0 0.0
    %694 = vmatprep.subr.mxu0 0.0
    %695 = vmatpush1.msra.mxu0 0.0
    %696 = vmatprep.subr.mxu0 0.0
    %697 = vmatpush1.msra.mxu0 0.0
    %698 = vmatprep.subr.mxu0 0.0
    %699 = vmatpush1.msra.mxu0 0.0
    %700 = vmatprep.subr.mxu0 0.0
    %701 = vmatpush1.msra.mxu0 0.0
    %702 = vmatprep.subr.mxu0 0.0
    %703 = vmatpush1.msra.mxu0 0.0
    %704 = vmatprep.subr.mxu0 0.0
    %705 = vmatpush1.msra.mxu0 0.0
    %706 = vmatprep.subr.mxu0 0.0
    %707 = vmatpush1.msra.mxu0 0.0
    %708 = vmatprep.subr.mxu0 0.0
    %709 = vmatpush1.msra.mxu0 0.0
    %710 = vmatprep.subr.mxu0 0.0
    %711 = vmatpush1.msra.mxu0 0.0
    %712 = vmatprep.subr.mxu0 0.0
    %713 = vmatpush1.msra.mxu0 0.0
    %714 = vmatprep.subr.mxu0 0.0
    %715 = vmatpush1.msra.mxu0 0.0
    %716 = vmatprep.subr.mxu0 0.0
    %717 = vmatpush1.msra.mxu0 0.0
    %718 = vmatprep.subr.mxu0 0.0
    %719 = vmatpush1.msra.mxu0 0.0
    %720 = vmatprep.subr.mxu0 0.0
    %721 = vmatpush1.msra.mxu0 0.0
    %722 = vmatprep.mubr.f32.mxu0 0.0
    %723 = vmatmul.mubr.f32.gmra.mrb[0].mxu0 %v623
    %v724 = vpop.f32.mrb[0].mxu0
    %v725 = vadd.f32 %v575, %v724
    %v726 = vpop.f32.mrb[0].mxu0
    %727 = vmatprep.mubr.f32.mxu0 0.0
    %728 = vmatmul.mubr.f32.gmra.mrb[0].mxu0 %v626
    %v729 = vpop.f32.mrb[0].mxu0
    %v730 = vadd.f32 %v579, %v729
    %v731 = vpop.f32.mrb[0].mxu0
    %732 = vmatprep.mubr.f32.mxu0 0.0
    %733 = vmatmul.mubr.f32.gmra.mrb[0].mxu0 %v629
    %v734 = vpop.f32.mrb[0].mxu0
    %v735 = vadd.f32 %v583, %v734
    %v736 = vpop.f32.mrb[0].mxu0
    %737 = vmatprep.mubr.f32.mxu0 0.0
    %738 = vmatmul.mubr.f32.gmra.mrb[0].mxu0 %v632
    %v739 = vpop.f32.mrb[0].mxu0
    %v740 = vadd.f32 %v587, %v739
    %v741 = vpop.f32.mrb[0].mxu0
    %742 = vmatprep.mubr.f32.mxu0 0.0
    %743 = vmatmul.mubr.f32.gmra.mrb[0].mxu0 %v635
    %v744 = vpop.f32.mrb[0].mxu0
    %v745 = vadd.f32 %v591, %v744
    %v746 = vpop.f32.mrb[0].mxu0
    %747 = vmatprep.mubr.f32.mxu0 0.0
    %748 = vmatmul.mubr.f32.gmra.mrb[0].mxu0 %v638
    %v749 = vpop.f32.mrb[0].mxu0
    %v750 = vadd.f32 %v595, %v749
    %v751 = vpop.f32.mrb[0].mxu0
    %752 = vmatprep.mubr.f32.mxu0 0.0
    %753 = vmatmul.mubr.f32.gmra.mrb[0].mxu0 %v641
    %v754 = vpop.f32.mrb[0].mxu0
    %v755 = vadd.f32 %v599, %v754
    %v756 = vpop.f32.mrb[0].mxu0
    %757 = vmatprep.mubr.f32.mxu0 0.0
    %758 = vmatmul.mubr.f32.gmra.mrb[0].mxu0 %v644
    %v759 = vpop.f32.mrb[0].mxu0
    %v760 = vadd.f32 %v603, %v759
    %v761 = vpop.f32.mrb[0].mxu0
    %762 = vmatprep.mubr.f32.mxu0 0.0
    %763 = vmatmul.mubr.f32.gmra.mrb[0].mxu0 %v647
    %v764 = vpop.f32.mrb[0].mxu0
    %v765 = vadd.f32 %v607, %v764
    %v766 = vpop.f32.mrb[0].mxu0
    %767 = vmatprep.mubr.f32.mxu0 0.0
    %768 = vmatmul.mubr.f32.gmra.mrb[0].mxu0 %v650
    %v769 = vpop.f32.mrb[0].mxu0
    %v770 = vadd.f32 %v611, %v769
    %v771 = vpop.f32.mrb[0].mxu0
    %772 = vmatprep.mubr.f32.mxu0 0.0
    %773 = vmatmul.mubr.f32.gmra.mrb[0].mxu0 %v653
    %v774 = vpop.f32.mrb[0].mxu0
    %v775 = vadd.f32 %v615, %v774
    %v776 = vpop.f32.mrb[0].mxu0
    %777 = vmatprep.mubr.f32.mxu0 0.0
    %778 = vmatmul.mubr.f32.gmra.mrb[0].mxu0 %v656
    %v779 = vpop.f32.mrb[0].mxu0
    %v780 = vadd.f32 %v619, %v779
    %v781 = vpop.f32.mrb[0].mxu0
    %782 = vdwg.mxu0
    %v783 = vxor.u32 %v725, 2147483648
    %v784 = vxor.u32 %v730, 2147483648
    %v785 = vxor.u32 %v735, 2147483648
    %v786 = vmul.f32 %v783, 1.442695
    %v787 = vpow.pop %v786
    %v788 = vmul.f32 %v784, 1.442695
    %v789 = vpow.pop %v788
    %v790 = vmul.f32 %v785, 1.442695
    %v791 = vpow.pop %v790
    %v792 = vadd.f32 %v787, 1.0
    %v793 = vadd.f32 %v789, 1.0
    %v794 = vadd.f32 %v791, 1.0
    %v795 = vrcp.pop %v792
    %v796 = vmul.f32 1.0, %v795
    %v797 = vrcp.pop %v793
    %v798 = vmul.f32 1.0, %v797
    %v799 = vrcp.pop %v794
    %v800 = vmul.f32 1.0, %v799
    %v801 = vxor.u32 %v740, 2147483648
    %v802 = vxor.u32 %v745, 2147483648
    %v803 = vxor.u32 %v750, 2147483648
    %v804 = vmul.f32 %v801, 1.442695
    %v805 = vpow.pop %v804
    %v806 = vmul.f32 %v802, 1.442695
    %v807 = vpow.pop %v806
    %v808 = vmul.f32 %v803, 1.442695
    %v809 = vpow.pop %v808
    %v810 = vadd.f32 %v805, 1.0
    %v811 = vadd.f32 %v807, 1.0
    %v812 = vadd.f32 %v809, 1.0
    %v813 = vrcp.pop %v810
    %v814 = vmul.f32 1.0, %v813
    %v815 = vrcp.pop %v811
    %v816 = vmul.f32 1.0, %v815
    %v817 = vrcp.pop %v812
    %v818 = vmul.f32 1.0, %v817
    %v819 = vtanh.pop %v755
    %v820 = vtanh.pop %v760
    %v821 = vtanh.pop %v765
    %v822 = vxor.u32 %v770, 2147483648
    %v823 = vxor.u32 %v775, 2147483648
    %v824 = vxor.u32 %v780, 2147483648
    %v825 = vmul.f32 %v822, 1.442695
    %v826 = vpow.pop %v825
    %v827 = vmul.f32 %v823, 1.442695
    %v828 = vpow.pop %v827
    %v829 = vmul.f32 %v824, 1.442695
    %v830 = vpow.pop %v829
    %v831 = vadd.f32 %v826, 1.0
    %v832 = vadd.f32 %v828, 1.0
    %v833 = vadd.f32 %v830, 1.0
    %v834 = vrcp.pop %v831
    %v835 = vmul.f32 1.0, %v834
    %v836 = vrcp.pop %v832
    %v837 = vmul.f32 1.0, %v836
    %v838 = vrcp.pop %v833
    %v839 = vmul.f32 1.0, %v838
    %v840 = vmul.f32 %v814, %v138
    %v841 = vmul.f32 %v816, %v139
    %v842 = vmul.f32 %v818, %v140
    %v843 = vmul.f32 %v796, %v819
    %v844 = vmul.f32 %v798, %v820
    %v845 = vmul.f32 %v800, %v821
    %v846 = vadd.f32 %v840, %v843
    %v847 = vadd.f32 %v841, %v844
    %v848 = vadd.f32 %v842, %v845
    %v849 = vtanh.pop %v846
    %v850 = vtanh.pop %v847
    %v851 = vtanh.pop %v848
    %v852 = vmul.f32 %v835, %v849
    %v853 = vmul.f32 %v837, %v850
    %v854 = vmul.f32 %v839, %v851
    %v855 = vld [vmem:[#allocation14] sm:$0xff]
    %v856 = vld [vmem:[#allocation14 + $0x8] sm:$0xff]
    %v857 = vld [vmem:[#allocation14 + $0x10] sm:$0xff]
    %859 = vset.pattern.permute.xlu0 0
    %860 = vperm.xlu0 %859, %v855
    %v861 = vpop.permute.xlu0 %860
    %864 = vset.pattern.permute.xlu0 0
    %865 = vperm.xlu0 %864, %v856
    %v866 = vpop.permute.xlu0 %865
    %869 = vset.pattern.permute.xlu0 0
    %870 = vperm.xlu0 %869, %v857
    %v871 = vpop.permute.xlu0 %870
    %v873 = vmul.f32 %v852, %v861
    %v874 = vmul.f32 %v853, %v866
    %v875 = vmul.f32 %v854, %v871
    %v876 = vadd.f32 %v873, %v874
    %v877 = vadd.f32 %v876, %v875
    %v878 = vrot.slane %v877, 4
    %v879 = vadd.f32 %v877, %v878
    %v880 = vrot.slane %v879, 2
    %v881 = vadd.f32 %v879, %v880
    %v882 = vrot.slane %v881, 1
    %v883 = vadd.f32 %v881, %v882
    %v884 = vld [vmem:[#allocation2] sm:$0x1]
    %886 = vset.pattern.permute.xlu0 0
    %887 = vperm.xlu0 %886, %v884
    %v888 = vpop.permute.xlu0 %887
    %v890 = vlaneseq
    %v891 = vshrl.u32 %v890, 7
    %v892 = vsub.s32 0, %v891
    %v893 = vrot.slane %v888, %v892
    %v894 = vadd.f32 %v883, %v893
    %895 = vst [vmem:[#allocation15] sm:$0x1] %v894
    %896 = vst [vmem:[#allocation16] sm:$0xff] %v558
    %897 = vst [vmem:[#allocation16 + $0x8] sm:$0xff] %v559
    %898 = vst [vmem:[#allocation16 + $0x10] sm:$0xff] %v560
    %899 = vst [vmem:[#allocation16 + $0x18] sm:$0xff] %v552
    %900 = vst [vmem:[#allocation16 + $0x20] sm:$0xff] %v553
    %901 = vst [vmem:[#allocation16 + $0x28] sm:$0xff] %v554
    %902 = vst [vmem:[#allocation16 + $0x30] sm:$0xff] %v852
    %903 = vst [vmem:[#allocation16 + $0x38] sm:$0xff] %v853
    %904 = vst [vmem:[#allocation16 + $0x40] sm:$0xff] %v854
    %905 = vst [vmem:[#allocation16 + $0x48] sm:$0xff] %v846
    %906 = vst [vmem:[#allocation16 + $0x50] sm:$0xff] %v847
    %907 = vst [vmem:[#allocation16 + $0x58] sm:$0xff] %v848
    // Predicated region
    $region62: #{forward.1} parent=1 // pred_check
      _
    $region63: #{forward.1} parent=1 // pred_check_branch
      %909 = sbr.rel (0) target = $region65
    $region64: #{forward.1} parent=1 // pred_region
      %s911 = ssub.s32 16, 16
      %912 = vsyncadd [#allocation5], %s911
      %s914 = sshll.u32 [#allocation15], 4
      %s915 = int_to_ptr.vmem [resolvable:$true] %s914
      %917 = dma.vmem_to_hbm [thread:$0]  %s915, 16, %s8, [#allocation5]
    $region65: #{forward.1} parent=1 // pred_fallthru
      _
    // Predicated region
    $region66: #{forward.1} parent=1 // pred_check
      _
    $region67: #{forward.1} parent=1 // pred_check_branch
      %919 = sbr.rel (0) target = $region69
    $region68: #{forward.1} parent=1 // pred_region
      %s921 = ssub.s32 1536, 1536
      %922 = vsyncadd [#allocation17], %s921
      %s923 = sshll.u32 [#allocation16], 4
      %s924 = int_to_ptr.vmem [resolvable:$true] %s923
      %929 = dma.vmem_to_hbm [thread:$0]  %s924, 1536, %s9, [#allocation17], 128, 128, 8
    $region69: #{forward.1} parent=1 // pred_fallthru
      _
    // Predicated region
    $region70: #{forward.1} parent=1 // pred_check
      _
    $region71: #{forward.1} parent=1 // pred_check_branch
      %931 = sbr.rel (0) target = $region73
    $region72: #{forward.1} parent=1 // pred_region
      %932 = dma.done [#allocation5], 16
    $region73: #{forward.1} parent=1 // pred_fallthru
      _
    // Predicated region
    $region74: #{forward.1} parent=1 // pred_check
      _
    $region75: #{forward.1} parent=1 // pred_check_branch
      %934 = sbr.rel (0) target = $region77
    $region76: #{forward.1} parent=1 // pred_region
      %935 = dma.done [#allocation17], 1536
    $region77: #{forward.1} parent=1 // pred_fallthru
      _
    %936 = vsyncpa [#allocation4], 1
    %937 = vsyncpa [#allocation7], 1
    %938 = vsyncpa [#allocation10], 1
    %939 = vsyncpa [#allocation13], 1
    %940 = vsyncpa [#allocation5], 1
    %941 = vsyncpa [#allocation17], 1

</llo_original>
